<compile_context>
chip_gen: v6e
topology: v6e:2x2x1
jax: 0.10.0
libtpu: 0.0.40
codegen_flags: <defaults>
</compile_context>

<pallas_src>
import functools

import jax
import jax.numpy as jnp
from jax.experimental import pallas as pl
from jax.experimental.pallas import tpu as pltpu


LANE = 128            # lane width; feature dims are padded to multiples of this
DEFAULT_TILE_B = 512  # rows per grid step (mem-bound sweet spot is 512-1024)


def _round_up(x, m):
    return (x + m - 1) // m * m


def _mlp_kernel(s_ref, w1_ref, b1_ref, w2_ref, b2_ref, w3_ref, b3_ref, o_ref):
    # s_ref is already bf16 (cast fused with the pad in the wrapper).
    # Layer 1: Linear + ReLU  (bf16 MXU inputs, f32 accumulate + elementwise)
    h1 = jnp.dot(s_ref[...], w1_ref[...], preferred_element_type=jnp.float32)
    h1 = jnp.maximum(h1 + b1_ref[...], 0.0)
    # Layer 2: Linear + ReLU
    h2 = jnp.dot(h1.astype(jnp.bfloat16), w2_ref[...],
                 preferred_element_type=jnp.float32)
    h2 = jnp.maximum(h2 + b2_ref[...], 0.0)
    # Layer 3: Linear (logits, no activation)
    out = jnp.dot(h2.astype(jnp.bfloat16), w3_ref[...],
                  preferred_element_type=jnp.float32)
    o_ref[...] = (out + b3_ref[...]).astype(o_ref.dtype)


def _dense_forward(s, params, *, s_dim):
    """Plain-JAX path with the same bf16-matmul / f32-accumulate math.
    Returns lane-padded logits [B, a_pad].  Used as the tiny-batch fast path
    and as the correctness reference."""
    w1, b1, w2, b2, w3, b3 = params
    s_pad = w1.shape[0]
    x = jnp.pad(s.astype(jnp.bfloat16), ((0, 0), (0, s_pad - s_dim)))
    h1 = jnp.maximum(
        jnp.dot(x, w1, preferred_element_type=jnp.float32) + b1, 0.0)
    h2 = jnp.maximum(
        jnp.dot(h1.astype(jnp.bfloat16), w2, preferred_element_type=jnp.float32) + b2, 0.0)
    return jnp.dot(h2.astype(jnp.bfloat16), w3,
                   preferred_element_type=jnp.float32) + b3


@functools.partial(
    jax.jit,
    static_argnames=("s_dim", "a_dim", "tile_b", "logits_dtype",
                     "return_padded", "min_pallas_batch"))
def multi_discrete_policy_forward(s, params, *, s_dim, a_dim,
                                  tile_b=DEFAULT_TILE_B,
                                  logits_dtype=jnp.float32,
                                  return_padded=False,
                                  min_pallas_batch=0):
    """s: [B, s_dim] float32 -> a_weights: [B, a_dim] (or [B8, a_pad] if
    return_padded=True, letting the consumer index the first a_dim columns)."""
    w1, b1, w2, b2, w3, b3 = params
    B = s.shape[0]
    s_pad = w1.shape[0]   # padded s_dim (multiple of 128)
    h_dim = w1.shape[1]
    a_pad = w3.shape[1]   # padded a_dim (multiple of 128)

    # Tiny-batch fast path (typical RL action selection): pallas launch + pad +
    # slice would dominate wall-clock.  Disabled by default (threshold 0).
    if B < min_pallas_batch:
        out = _dense_forward(s, params, s_dim=s_dim)
        return out if return_padded else out[:, :a_dim]

    # Batch tile: multiple of 8 sublanes, <= tile_b, and capped so the grid has
    # at least 2 steps when B allows it (so v7x's two TensorCores both get work).
    b8 = _round_up(B, 8)
    tb = max(8, min(_round_up(tile_b, 8), _round_up(pl.cdiv(b8, 2), 8)))
    grid = (pl.cdiv(b8, tb),)   # ragged last block is masked by Pallas

    # Fused pad + bf16 cast of the state (one cheap XLA op, half the streamed
    # bytes).  Padded feature columns hit zero rows of w1; padded / masked batch
    # rows never reach the valid output.
    s_p = jnp.pad(s.astype(jnp.bfloat16), ((0, b8 - B), (0, s_pad - s_dim)))

    out_itemsize = jnp.dtype(logits_dtype).itemsize
    weight_bytes = ((s_pad * h_dim + h_dim * h_dim + h_dim * a_pad) * 2
                    + (2 * h_dim + a_pad) * 4)
    flops = 2 * b8 * (s_pad * h_dim + h_dim * h_dim + h_dim * a_pad)
    bytes_accessed = (b8 * s_pad * 2 + b8 * a_pad * out_itemsize + weight_bytes)

    # VMEM budget: double-buffered s/out tiles + resident weights.  Keep well
    # under v7x's 32 MiB scoped default (64 MiB physical); raise vmem_limit_bytes
    # explicitly if tile_b / h_dim are ever scaled past this.
    vmem_bytes = 2 * tb * s_pad * 2 + 2 * tb * a_pad * out_itemsize + weight_bytes
    assert vmem_bytes < (24 << 20), (
        f"VMEM footprint {vmem_bytes} B too large: shrink tile_b or set "
        "pltpu.CompilerParams(vmem_limit_bytes=...) with headroom")

    out = pl.pallas_call(
        _mlp_kernel,
        out_shape=jax.ShapeDtypeStruct((b8, a_pad), logits_dtype),
        grid=grid,
        in_specs=[
            pl.BlockSpec((tb, s_pad), lambda i: (i, 0)),       # s tile (pipelined, bf16)
            pl.BlockSpec((s_pad, h_dim), lambda i: (0, 0)),    # w1 (VMEM-resident)
            pl.BlockSpec((1, h_dim), lambda i: (0, 0)),        # b1 (resident)
            pl.BlockSpec((h_dim, h_dim), lambda i: (0, 0)),    # w2 (resident)
            pl.BlockSpec((1, h_dim), lambda i: (0, 0)),        # b2 (resident)
            pl.BlockSpec((h_dim, a_pad), lambda i: (0, 0)),    # w3 (resident)
            pl.BlockSpec((1, a_pad), lambda i: (0, 0)),        # b3 (resident)
        ],
        out_specs=pl.BlockSpec((tb, a_pad), lambda i: (i, 0)),
        compiler_params=pltpu.CompilerParams(
            dimension_semantics=("parallel",),
        ),
        cost_estimate=pl.CostEstimate(
            flops=flops, transcendentals=0, bytes_accessed=bytes_accessed),
    )(s_p, w1, b1, w2, b2, w3, b3)

    if return_padded:
        # Skip the extra HBM round trip of the slice; caller uses out[:B, :a_dim].
        return out
    return out[:B, :a_dim]


def init_params(key, s_dim, h_dim, a_dim):
    """PyTorch-Linear-style uniform(-1/sqrt(fan_in), 1/sqrt(fan_in)) init,
    zero-padded to lane-dense shapes.  Weights stored in bf16 (MXU-native),
    biases in f32."""
    s_pad = _round_up(s_dim, LANE)
    h_pad = _round_up(h_dim, LANE)
    a_pad = _round_up(a_dim, LANE)

    def linear(k, fan_in, fan_out, in_pad, out_pad):
        kw, kb = jax.random.split(k)
        bound = 1.0 / jnp.sqrt(jnp.float32(fan_in))
        w = jax.random.uniform(kw, (fan_in, fan_out), jnp.float32, -bound, bound)
        b = jax.random.uniform(kb, (1, fan_out), jnp.float32, -bound, bound)
        w_p = jnp.zeros((in_pad, out_pad), jnp.float32).at[:fan_in, :fan_out].set(w)
        b_p = jnp.zeros((1, out_pad), jnp.float32).at[:, :fan_out].set(b)
        return w_p.astype(jnp.bfloat16), b_p

    k1, k2, k3 = jax.random.split(key, 3)
    w1, b1 = linear(k1, s_dim, h_dim, s_pad, h_pad)
    w2, b2 = linear(k2, h_dim, h_dim, h_pad, h_pad)
    w3, b3 = linear(k3, h_dim, a_dim, h_pad, a_pad)
    return (w1, b1, w2, b2, w3, b3)


def reference_forward(s, params, *, s_dim, a_dim):
    return _dense_forward(s, params, s_dim=s_dim)[:, :a_dim]


# TODO(synk): select_action / get_log_prob (sigmoid + multinomial sampling with
# torch RNG-state juggling) are not part of forward(); only the MLP is fused here.


if __name__ == "__main__":
    # Small shapes consistent with the module: s is [B, s_dim].
    s_dim, h_dim, a_dim = 64, 128, 32
    key = jax.random.PRNGKey(0)
    k_params, k_s = jax.random.split(key)
    params = init_params(k_params, s_dim, h_dim, a_dim)

    # Batch big enough to give the "parallel" grid >= 2 steps (dual-TC on v7x).
    B = 96
    s = jax.random.normal(k_s, (B, s_dim), jnp.float32)
    out = multi_discrete_policy_forward(s, params, s_dim=s_dim, a_dim=a_dim)
    out = jax.block_until_ready(out)
    ref = reference_forward(s, params, s_dim=s_dim, a_dim=a_dim)
    assert out.shape == (B, a_dim)
    assert jnp.allclose(out, ref, atol=2e-2, rtol=2e-2), (
        float(jnp.max(jnp.abs(out - ref))))

    # Ragged batch (not a multiple of the tile): exercises the masked last block.
    B2 = 50
    s2 = jax.random.normal(jax.random.PRNGKey(1), (B2, s_dim), jnp.float32)
    out2 = jax.block_until_ready(
        multi_discrete_policy_forward(s2, params, s_dim=s_dim, a_dim=a_dim))
    ref2 = reference_forward(s2, params, s_dim=s_dim, a_dim=a_dim)
    assert out2.shape == (B2, a_dim)
    assert jnp.allclose(out2, ref2, atol=2e-2, rtol=2e-2), (
        float(jnp.max(jnp.abs(out2 - ref2))))

    # Tiny-batch fast path (plain jnp, no pallas launch) still matches.
    s3 = jax.random.normal(jax.random.PRNGKey(2), (4, s_dim), jnp.float32)
    out3 = jax.block_until_ready(
        multi_discrete_policy_forward(s3, params, s_dim=s_dim, a_dim=a_dim,
                                      min_pallas_batch=64))
    assert jnp.allclose(out3, reference_forward(s3, params, s_dim=s_dim, a_dim=a_dim),
                        atol=2e-2, rtol=2e-2)

    print("KERNEL_OK")
</pallas_src>

<mosaic_0001>
module attributes {stable_mosaic.version = 11 : i64} {
  func.func @_mlp_kernel(%arg0: i32, %arg1: memref<48x128xbf16, #tpu.memory_space<vmem>>, %arg2: memref<128x128xbf16, #tpu.memory_space<vmem>>, %arg3: memref<1x128xf32, #tpu.memory_space<vmem>>, %arg4: memref<128x128xbf16, #tpu.memory_space<vmem>>, %arg5: memref<1x128xf32, #tpu.memory_space<vmem>>, %arg6: memref<128x128xbf16, #tpu.memory_space<vmem>>, %arg7: memref<1x128xf32, #tpu.memory_space<vmem>>, %arg8: memref<48x128xf32, #tpu.memory_space<vmem>>) attributes {dimension_semantics = [#tpu.dimension_semantics<parallel>], iteration_bounds = array<i64: 2>, scalar_prefetch = 0 : i64, scratch_operands = 0 : i64, tpu.core_type = #tpu.core_type<tc>, window_params = [{transform_indices = @transform_0, window_bounds = array<i64: 48, 128>}, {pipeline_mode = #tpu.pipeline_mode<synchronous>, transform_indices = @transform_1, window_bounds = array<i64: 128, 128>}, {pipeline_mode = #tpu.pipeline_mode<synchronous>, transform_indices = @transform_2, window_bounds = array<i64: 1, 128>}, {pipeline_mode = #tpu.pipeline_mode<synchronous>, transform_indices = @transform_3, window_bounds = array<i64: 128, 128>}, {pipeline_mode = #tpu.pipeline_mode<synchronous>, transform_indices = @transform_4, window_bounds = array<i64: 1, 128>}, {pipeline_mode = #tpu.pipeline_mode<synchronous>, transform_indices = @transform_5, window_bounds = array<i64: 128, 128>}, {pipeline_mode = #tpu.pipeline_mode<synchronous>, transform_indices = @transform_6, window_bounds = array<i64: 1, 128>}, {transform_indices = @transform_7, window_bounds = array<i64: 48, 128>}]} {
    %c0 = arith.constant 0 : index
    %c0_0 = arith.constant 0 : index
    %0 = vector.load %arg1[%c0, %c0_0] : memref<48x128xbf16, #tpu.memory_space<vmem>>, vector<48x128xbf16>
    %c0_1 = arith.constant 0 : index
    %c0_2 = arith.constant 0 : index
    %1 = vector.load %arg2[%c0_1, %c0_2] : memref<128x128xbf16, #tpu.memory_space<vmem>>, vector<128x128xbf16>
    %cst = arith.constant dense<0.000000e+00> : vector<48x128xf32>
    %2 = tpu.matmul %0, %1, %cst {dimension_numbers = #tpu.dot_dimension_numbers<[1], [0], [0], [1], [0, 0, 1, 1], [], []>} : vector<48x128xbf16>, vector<128x128xbf16>, vector<48x128xf32> -> vector<48x128xf32>
    %c0_3 = arith.constant 0 : index
    %c0_4 = arith.constant 0 : index
    %3 = vector.load %arg3[%c0_3, %c0_4] : memref<1x128xf32, #tpu.memory_space<vmem>>, vector<1x128xf32>
    %4 = vector.broadcast %3 : vector<1x128xf32> to vector<48x128xf32>
    %5 = arith.addf %2, %4 : vector<48x128xf32>
    %cst_5 = arith.constant 0.000000e+00 : f32
    %6 = vector.broadcast %cst_5 : f32 to vector<48x128xf32>
    %7 = arith.maximumf %5, %6 : vector<48x128xf32>
    %8 = arith.truncf %7 : vector<48x128xf32> to vector<48x128xbf16>
    %c0_6 = arith.constant 0 : index
    %c0_7 = arith.constant 0 : index
    %9 = vector.load %arg4[%c0_6, %c0_7] : memref<128x128xbf16, #tpu.memory_space<vmem>>, vector<128x128xbf16>
    %cst_8 = arith.constant dense<0.000000e+00> : vector<48x128xf32>
    %10 = tpu.matmul %8, %9, %cst_8 {dimension_numbers = #tpu.dot_dimension_numbers<[1], [0], [0], [1], [0, 0, 1, 1], [], []>} : vector<48x128xbf16>, vector<128x128xbf16>, vector<48x128xf32> -> vector<48x128xf32>
    %c0_9 = arith.constant 0 : index
    %c0_10 = arith.constant 0 : index
    %11 = vector.load %arg5[%c0_9, %c0_10] : memref<1x128xf32, #tpu.memory_space<vmem>>, vector<1x128xf32>
    %12 = vector.broadcast %11 : vector<1x128xf32> to vector<48x128xf32>
    %13 = arith.addf %10, %12 : vector<48x128xf32>
    %cst_11 = arith.constant 0.000000e+00 : f32
    %14 = vector.broadcast %cst_11 : f32 to vector<48x128xf32>
    %15 = arith.maximumf %13, %14 : vector<48x128xf32>
    %16 = arith.truncf %15 : vector<48x128xf32> to vector<48x128xbf16>
    %c0_12 = arith.constant 0 : index
    %c0_13 = arith.constant 0 : index
    %17 = vector.load %arg6[%c0_12, %c0_13] : memref<128x128xbf16, #tpu.memory_space<vmem>>, vector<128x128xbf16>
    %cst_14 = arith.constant dense<0.000000e+00> : vector<48x128xf32>
    %18 = tpu.matmul %16, %17, %cst_14 {dimension_numbers = #tpu.dot_dimension_numbers<[1], [0], [0], [1], [0, 0, 1, 1], [], []>} : vector<48x128xbf16>, vector<128x128xbf16>, vector<48x128xf32> -> vector<48x128xf32>
    %c0_15 = arith.constant 0 : index
    %c0_16 = arith.constant 0 : index
    %19 = vector.load %arg7[%c0_15, %c0_16] : memref<1x128xf32, #tpu.memory_space<vmem>>, vector<1x128xf32>
    %20 = vector.broadcast %19 : vector<1x128xf32> to vector<48x128xf32>
    %21 = arith.addf %18, %20 : vector<48x128xf32>
    %c0_17 = arith.constant 0 : index
    %c0_18 = arith.constant 0 : index
    %22 = vector.load %arg8[%c0_17, %c0_18] : memref<48x128xf32, #tpu.memory_space<vmem>>, vector<48x128xf32>
    tpu.vector_store %arg8[%c0_17, %c0_18], %21 {strides = array<i32>} : memref<48x128xf32, #tpu.memory_space<vmem>>, vector<48x128xf32>,
    return
  }
  func.func @transform_0(%arg0: i32) -> (i32, i32) {
    %c0_i32 = arith.constant 0 : i32
    %c0_i32_0 = arith.constant 0 : i32
    return %arg0, %c0_i32 : i32, i32
  }
  func.func @transform_1(%arg0: i32) -> (i32, i32) {
    %c0_i32 = arith.constant 0 : i32
    %c0_i32_0 = arith.constant 0 : i32
    %c0_i32_1 = arith.constant 0 : i32
    return %c0_i32, %c0_i32_0 : i32, i32
  }
  func.func @transform_2(%arg0: i32) -> (i32, i32) {
    %c0_i32 = arith.constant 0 : i32
    %c0_i32_0 = arith.constant 0 : i32
    %c0_i32_1 = arith.constant 0 : i32
    return %c0_i32, %c0_i32_0 : i32, i32
  }
  func.func @transform_3(%arg0: i32) -> (i32, i32) {
    %c0_i32 = arith.constant 0 : i32
    %c0_i32_0 = arith.constant 0 : i32
    %c0_i32_1 = arith.constant 0 : i32
    return %c0_i32, %c0_i32_0 : i32, i32
  }
  func.func @transform_4(%arg0: i32) -> (i32, i32) {
    %c0_i32 = arith.constant 0 : i32
    %c0_i32_0 = arith.constant 0 : i32
    %c0_i32_1 = arith.constant 0 : i32
    return %c0_i32, %c0_i32_0 : i32, i32
  }
  func.func @transform_5(%arg0: i32) -> (i32, i32) {
    %c0_i32 = arith.constant 0 : i32
    %c0_i32_0 = arith.constant 0 : i32
    %c0_i32_1 = arith.constant 0 : i32
    return %c0_i32, %c0_i32_0 : i32, i32
  }
  func.func @transform_6(%arg0: i32) -> (i32, i32) {
    %c0_i32 = arith.constant 0 : i32
    %c0_i32_0 = arith.constant 0 : i32
    %c0_i32_1 = arith.constant 0 : i32
    return %c0_i32, %c0_i32_0 : i32, i32
  }
  func.func @transform_7(%arg0: i32) -> (i32, i32) {
    %c0_i32 = arith.constant 0 : i32
    %c0_i32_0 = arith.constant 0 : i32
    return %arg0, %c0_i32 : i32, i32
  }
}

</mosaic_0001>

<llo_original>
// kernel: multi_discrete_policy_forward.1
$region0: #{multi_discrete_policy_forward.1}
  #allocation0 [shape = 'u32[]', space=smem, size = 0x4, offset = 0x4, fixed_abs, tag = 'smem constant byte address 0x4 - core index']
  #allocation1 [shape = 'u32[144,128]{1,0:T(1,128)}', space=vmem, size = 0x12000, scoped, tag = 'internal scratch']
  %s0 = inlined_call_operand.vmem [shape: bf16[96,128], index: 0, kind: input, shape index: {}]
  %s1 = inlined_call_operand.vmem [shape: bf16[128,128], index: 1, kind: input, shape index: {}]
  %s2 = inlined_call_operand.vmem [shape: f32[1,128], index: 2, kind: input, shape index: {}]
  %s3 = inlined_call_operand.vmem [shape: bf16[128,128], index: 3, kind: input, shape index: {}]
  %s4 = inlined_call_operand.vmem [shape: f32[1,128], index: 4, kind: input, shape index: {}]
  %s5 = inlined_call_operand.vmem [shape: bf16[128,128], index: 5, kind: input, shape index: {}]
  %s6 = inlined_call_operand.vmem [shape: f32[1,128], index: 6, kind: input, shape index: {}]
  %s7 = inlined_call_operand.vmem [shape: f32[96,128], index: 7, kind: output, shape index: {}]
  %s8 = sld [smem:[#allocation0]]
  $region61: #{multi_discrete_policy_forward.1} parent=0
    _
  %s10 = ssub.s32 1, %s8
  %s11 = scalar_select 0, %s10, %s8
  loop: start=0, step=1, limit=4
  $region2: #{multi_discrete_policy_forward.1} parent=0 // loop_pre_header
    _
  $region3: #{multi_discrete_policy_forward.1} parent=0 // loop_header
    %s13 = sphi 0, %s17
    %p14 = scmp.ge.s32.totalorder %s13, 4
    %s23 = sphi 0, %s25
    %s26 = sphi 0, %s23
    %s27 = sphi 0, %s26
    %s43 = sphi 0, %s27
    %s47 = sphi 0, %s47
    %s49 = sphi 0, %s47
    %s50 = sphi 0, %s49
    %s64 = sphi 0, %s50
    %s68 = sphi 0, %s68
    %s70 = sphi 0, %s68
    %s71 = sphi 0, %s70
    %s85 = sphi 0, %s71
    %s89 = sphi 0, %s89
    %s91 = sphi 0, %s89
    %s92 = sphi 0, %s91
    %s106 = sphi 0, %s92
    %s110 = sphi 0, %s110
    %s112 = sphi 0, %s110
    %s113 = sphi 0, %s112
    %s127 = sphi 0, %s113
    %s131 = sphi 0, %s131
    %s133 = sphi 0, %s131
    %s134 = sphi 0, %s133
    %s148 = sphi 0, %s134
    %s152 = sphi 0, %s152
    %s154 = sphi 0, %s152
    %s155 = sphi 0, %s154
    %s169 = sphi 0, %s155
    %s175 = sphi 0, %s177
    %s178 = sphi 0, %s175
    %s179 = sphi 0, %s178
    %s195 = sphi 0, %s179
  $region4: #{multi_discrete_policy_forward.1} parent=0 // loop_header_branch
    %16 = sbr.rel (%p14) target = $region8
  $region5: #{multi_discrete_policy_forward.1} parent=0 // loop_body
    %s18 = ssub.s32 %s13, 1
    %s19 = ssub.s32 %s13, 2
    %s20 = sadd.s32 %s13, 1
    %s21 = ssub.s32 %s13, %s20
    %p22 = scmp.eq.s32.totalorder %s21, 0
    %s24 = sadd.s32 %s23, 1
    %s25 = scalar_select %p22, %s23, %s24
    %p28 = pneg %p22
    %p29 = scmp.eq.s32.totalorder %s13, 1
    %p30 = por %p28, %p29
    %p31 = scmp.ne.s32.totalorder %s23, %s26
    %p32 = scmp.eq.s32.totalorder %s13, 0
    %p33 = por %p31, %p32
    %p34 = scmp.ne.s32.totalorder %s23, %s26
    %p35 = scmp.eq.s32.totalorder %s18, 1
    %p36 = por %p34, %p35
    %p37 = scmp.ne.s32.totalorder %s26, %s27
    %p38 = scmp.eq.s32.totalorder %s18, 0
    %p39 = por %p37, %p38
    %p40 = scmp.ne.s32.totalorder %s26, %s27
    %p41 = scmp.eq.s32.totalorder %s19, 1
    %p42 = por %p40, %p41
    %p44 = scmp.ne.s32.totalorder %s27, %s43
    %p45 = scmp.eq.s32.totalorder %s19, 0
    %p46 = por %p44, %p45
    %s48 = sadd.s32 %s47, 1
    %p51 = scmp.eq.s32.totalorder %s13, 1
    %p52 = scmp.ne.s32.totalorder %s47, %s49
    %p53 = scmp.eq.s32.totalorder %s13, 0
    %p54 = por %p52, %p53
    %p55 = scmp.ne.s32.totalorder %s47, %s49
    %p56 = scmp.eq.s32.totalorder %s18, 1
    %p57 = por %p55, %p56
    %p58 = scmp.ne.s32.totalorder %s49, %s50
    %p59 = scmp.eq.s32.totalorder %s18, 0
    %p60 = por %p58, %p59
    %p61 = scmp.ne.s32.totalorder %s49, %s50
    %p62 = scmp.eq.s32.totalorder %s19, 1
    %p63 = por %p61, %p62
    %p65 = scmp.ne.s32.totalorder %s50, %s64
    %p66 = scmp.eq.s32.totalorder %s19, 0
    %p67 = por %p65, %p66
    %s69 = sadd.s32 %s68, 1
    %p72 = scmp.eq.s32.totalorder %s13, 1
    %p73 = scmp.ne.s32.totalorder %s68, %s70
    %p74 = scmp.eq.s32.totalorder %s13, 0
    %p75 = por %p73, %p74
    %p76 = scmp.ne.s32.totalorder %s68, %s70
    %p77 = scmp.eq.s32.totalorder %s18, 1
    %p78 = por %p76, %p77
    %p79 = scmp.ne.s32.totalorder %s70, %s71
    %p80 = scmp.eq.s32.totalorder %s18, 0
    %p81 = por %p79, %p80
    %p82 = scmp.ne.s32.totalorder %s70, %s71
    %p83 = scmp.eq.s32.totalorder %s19, 1
    %p84 = por %p82, %p83
    %p86 = scmp.ne.s32.totalorder %s71, %s85
    %p87 = scmp.eq.s32.totalorder %s19, 0
    %p88 = por %p86, %p87
    %s90 = sadd.s32 %s89, 1
    %p93 = scmp.eq.s32.totalorder %s13, 1
    %p94 = scmp.ne.s32.totalorder %s89, %s91
    %p95 = scmp.eq.s32.totalorder %s13, 0
    %p96 = por %p94, %p95
    %p97 = scmp.ne.s32.totalorder %s89, %s91
    %p98 = scmp.eq.s32.totalorder %s18, 1
    %p99 = por %p97, %p98
    %p100 = scmp.ne.s32.totalorder %s91, %s92
    %p101 = scmp.eq.s32.totalorder %s18, 0
    %p102 = por %p100, %p101
    %p103 = scmp.ne.s32.totalorder %s91, %s92
    %p104 = scmp.eq.s32.totalorder %s19, 1
    %p105 = por %p103, %p104
    %p107 = scmp.ne.s32.totalorder %s92, %s106
    %p108 = scmp.eq.s32.totalorder %s19, 0
    %p109 = por %p107, %p108
    %s111 = sadd.s32 %s110, 1
    %p114 = scmp.eq.s32.totalorder %s13, 1
    %p115 = scmp.ne.s32.totalorder %s110, %s112
    %p116 = scmp.eq.s32.totalorder %s13, 0
    %p117 = por %p115, %p116
    %p118 = scmp.ne.s32.totalorder %s110, %s112
    %p119 = scmp.eq.s32.totalorder %s18, 1
    %p120 = por %p118, %p119
    %p121 = scmp.ne.s32.totalorder %s112, %s113
    %p122 = scmp.eq.s32.totalorder %s18, 0
    %p123 = por %p121, %p122
    %p124 = scmp.ne.s32.totalorder %s112, %s113
    %p125 = scmp.eq.s32.totalorder %s19, 1
    %p126 = por %p124, %p125
    %p128 = scmp.ne.s32.totalorder %s113, %s127
    %p129 = scmp.eq.s32.totalorder %s19, 0
    %p130 = por %p128, %p129
    %s132 = sadd.s32 %s131, 1
    %p135 = scmp.eq.s32.totalorder %s13, 1
    %p136 = scmp.ne.s32.totalorder %s131, %s133
    %p137 = scmp.eq.s32.totalorder %s13, 0
    %p138 = por %p136, %p137
    %p139 = scmp.ne.s32.totalorder %s131, %s133
    %p140 = scmp.eq.s32.totalorder %s18, 1
    %p141 = por %p139, %p140
    %p142 = scmp.ne.s32.totalorder %s133, %s134
    %p143 = scmp.eq.s32.totalorder %s18, 0
    %p144 = por %p142, %p143
    %p145 = scmp.ne.s32.totalorder %s133, %s134
    %p146 = scmp.eq.s32.totalorder %s19, 1
    %p147 = por %p145, %p146
    %p149 = scmp.ne.s32.totalorder %s134, %s148
    %p150 = scmp.eq.s32.totalorder %s19, 0
    %p151 = por %p149, %p150
    %s153 = sadd.s32 %s152, 1
    %p156 = scmp.eq.s32.totalorder %s13, 1
    %p157 = scmp.ne.s32.totalorder %s152, %s154
    %p158 = scmp.eq.s32.totalorder %s13, 0
    %p159 = por %p157, %p158
    %p160 = scmp.ne.s32.totalorder %s152, %s154
    %p161 = scmp.eq.s32.totalorder %s18, 1
    %p162 = por %p160, %p161
    %p163 = scmp.ne.s32.totalorder %s154, %s155
    %p164 = scmp.eq.s32.totalorder %s18, 0
    %p165 = por %p163, %p164
    %p166 = scmp.ne.s32.totalorder %s154, %s155
    %p167 = scmp.eq.s32.totalorder %s19, 1
    %p168 = por %p166, %p167
    %p170 = scmp.ne.s32.totalorder %s155, %s169
    %p171 = scmp.eq.s32.totalorder %s19, 0
    %p172 = por %p170, %p171
    %s173 = ssub.s32 %s13, %s20
    %p174 = scmp.eq.s32.totalorder %s173, 0
    %s176 = sadd.s32 %s175, 1
    %s177 = scalar_select %p174, %s175, %s176
    %p180 = pneg %p174
    %p181 = scmp.eq.s32.totalorder %s13, 1
    %p182 = por %p180, %p181
    %p183 = scmp.ne.s32.totalorder %s175, %s178
    %p184 = scmp.eq.s32.totalorder %s13, 0
    %p185 = por %p183, %p184
    %p186 = scmp.ne.s32.totalorder %s175, %s178
    %p187 = scmp.eq.s32.totalorder %s18, 1
    %p188 = por %p186, %p187
    %p189 = scmp.ne.s32.totalorder %s178, %s179
    %p190 = scmp.eq.s32.totalorder %s18, 0
    %p191 = por %p189, %p190
    %p192 = scmp.ne.s32.totalorder %s178, %s179
    %p193 = scmp.eq.s32.totalorder %s19, 1
    %p194 = por %p192, %p193
    %p196 = scmp.ne.s32.totalorder %s179, %s195
    %p197 = scmp.eq.s32.totalorder %s19, 0
    %p198 = por %p196, %p197
    %p199 = scmp.le.s32.totalorder 1, %s13
    %p200 = scmp.lt.s32.totalorder %s13, 3
    %p201 = pnand %p199, %p200
    %p202 = pneg %p201
    // Predicated region
    $region9: #{multi_discrete_policy_forward.1} parent=5 // pred_check
      _
    $region10: #{multi_discrete_policy_forward.1} parent=5 // pred_check_branch
      %204 = sbr.rel (%p201) target = $region12
    $region11: #{multi_discrete_policy_forward.1} parent=5 // pred_region
      %s205 = ssub.s32 %s13, 1
      // Predicated region
      $region13: #{multi_discrete_policy_forward.1} parent=11 // pred_check
        %p206 = pneg %p60
      $region14: #{multi_discrete_policy_forward.1} parent=11 // pred_check_branch
        %208 = sbr.rel (%p206) target = $region16
      $region15: #{multi_discrete_policy_forward.1} parent=11 // pred_region
        _
      $region16: #{multi_discrete_policy_forward.1} parent=11 // pred_fallthru
        _
      // Predicated region
      $region17: #{multi_discrete_policy_forward.1} parent=11 // pred_check
        %p209 = pneg %p81
      $region18: #{multi_discrete_policy_forward.1} parent=11 // pred_check_branch
        %211 = sbr.rel (%p209) target = $region20
      $region19: #{multi_discrete_policy_forward.1} parent=11 // pred_region
        _
      $region20: #{multi_discrete_policy_forward.1} parent=11 // pred_fallthru
        _
      // Predicated region
      $region21: #{multi_discrete_policy_forward.1} parent=11 // pred_check
        %p212 = pneg %p102
      $region22: #{multi_discrete_policy_forward.1} parent=11 // pred_check_branch
        %214 = sbr.rel (%p212) target = $region24
      $region23: #{multi_discrete_policy_forward.1} parent=11 // pred_region
        _
      $region24: #{multi_discrete_policy_forward.1} parent=11 // pred_fallthru
        _
      // Predicated region
      $region25: #{multi_discrete_policy_forward.1} parent=11 // pred_check
        %p215 = pneg %p123
      $region26: #{multi_discrete_policy_forward.1} parent=11 // pred_check_branch
        %217 = sbr.rel (%p215) target = $region28
      $region27: #{multi_discrete_policy_forward.1} parent=11 // pred_region
        _
      $region28: #{multi_discrete_policy_forward.1} parent=11 // pred_fallthru
        _
      // Predicated region
      $region29: #{multi_discrete_policy_forward.1} parent=11 // pred_check
        %p218 = pneg %p144
      $region30: #{multi_discrete_policy_forward.1} parent=11 // pred_check_branch
        %220 = sbr.rel (%p218) target = $region32
      $region31: #{multi_discrete_policy_forward.1} parent=11 // pred_region
        _
      $region32: #{multi_discrete_policy_forward.1} parent=11 // pred_fallthru
        _
      // Predicated region
      $region33: #{multi_discrete_policy_forward.1} parent=11 // pred_check
        %p221 = pneg %p165
      $region34: #{multi_discrete_policy_forward.1} parent=11 // pred_check_branch
        %223 = sbr.rel (%p221) target = $region36
      $region35: #{multi_discrete_policy_forward.1} parent=11 // pred_region
        _
      $region36: #{multi_discrete_policy_forward.1} parent=11 // pred_fallthru
        _
    $region12: #{multi_discrete_policy_forward.1} parent=5 // pred_fallthru
      _
    %p224 = scmp.lt.s32.totalorder %s13, 2
    // Predicated region
    $region37: #{multi_discrete_policy_forward.1} parent=5 // pred_check
      %p225 = pneg %p224
    $region38: #{multi_discrete_policy_forward.1} parent=5 // pred_check_branch
      %227 = sbr.rel (%p225) target = $region40
    $region39: #{multi_discrete_policy_forward.1} parent=5 // pred_region
      // Predicated region
      $region41: #{multi_discrete_policy_forward.1} parent=39 // pred_check
        %p228 = pneg %p33
      $region42: #{multi_discrete_policy_forward.1} parent=39 // pred_check_branch
        %230 = sbr.rel (%p228) target = $region44
      $region43: #{multi_discrete_policy_forward.1} parent=39 // pred_region
        %s231 = smul.u32 6, %s13
        %p232 = scmp.lt.s32.totalorder %s231, 11
        %s233 = scalar_select %p232, %s231, 11
        %s234 = smul.addr %s233, 4
        %s235 = scalar_lea.vmem %s0, %s234
        %s236 = smul.u32 6, %s13
      $region44: #{multi_discrete_policy_forward.1} parent=39 // pred_fallthru
        _
    $region40: #{multi_discrete_policy_forward.1} parent=5 // pred_fallthru
      _
    %p237 = scmp.le.s32.totalorder 1, %s13
    %p238 = scmp.lt.s32.totalorder %s13, 3
    %p239 = pnand %p237, %p238
    %p240 = pneg %p239
    // Predicated region
    $region45: #{multi_discrete_policy_forward.1} parent=5 // pred_check
      _
    $region46: #{multi_discrete_policy_forward.1} parent=5 // pred_check_branch
      %242 = sbr.rel (%p239) target = $region48
    $region47: #{multi_discrete_policy_forward.1} parent=5 // pred_region
      %s243 = ssub.s32 %s13, 1
      %s244 = smul.u32 6, %s18
      %p245 = scmp.lt.s32.totalorder %s244, 11
      %s246 = scalar_select %p245, %s244, 11
      %s247 = smul.addr %s246, 4
      %s248 = scalar_lea.vmem %s0, %s247
      %p249 = pneg %p39
      %p250 = pneg %p36
      %p251 = pneg %p60
      %p252 = pneg %p57
      %p253 = pneg %p81
      %p254 = pneg %p78
      %p255 = pneg %p102
      %p256 = pneg %p99
      %p257 = pneg %p123
      %p258 = pneg %p120
      %p259 = pneg %p144
      %p260 = pneg %p141
      %p261 = pneg %p165
      %p262 = pneg %p162
      %p263 = pneg %p191
      %p264 = pneg %p188
      %s265 = smul.u32 6, %s18
      %p266 = scmp.lt.s32.totalorder %s265, 11
      %s267 = scalar_select %p266, %s265, 11
      %s268 = smul.addr %s267, 8
      %s269 = scalar_lea.vmem %s7, %s268
      %s270 = smul.u32 6, %s18
      %p271 = scmp.lt.s32.totalorder %s270, 11
      %s272 = scalar_select %p271, %s270, 11
      %s273 = smul.addr %s272, 4
      %s274 = scalar_lea.vmem %s0, %s273
      %s275 = smul.u32 6, %s18
      %s276 = smul.u32 6, %s18
      %p277 = scmp.lt.s32.totalorder %s276, 11
      %s278 = scalar_select %p277, %s276, 11
      %s279 = smul.addr %s278, 8
      %s280 = scalar_lea.vmem %s7, %s279
      %s281 = smul.u32 6, %s18
      %v283 = vld [vmem:[%s274] sm:$0xf]
      %v284 = vld [vmem:[%s274 + $0x4] sm:$0xf]
      %v285 = vld [vmem:[%s274 + $0x8] sm:$0xf]
      %v286 = vld [vmem:[%s274 + $0xc] sm:$0xf]
      %v287 = vld [vmem:[%s274 + $0x10] sm:$0xf]
      %v288 = vld [vmem:[%s274 + $0x14] sm:$0xf]
      %v289 = vld [vmem:[%s1] sm:$0xf]
      %v290 = vld [vmem:[%s1 + $0x4] sm:$0xf]
      %v291 = vld [vmem:[%s1 + $0x8] sm:$0xf]
      %v292 = vld [vmem:[%s1 + $0xc] sm:$0xf]
      %v293 = vld [vmem:[%s1 + $0x10] sm:$0xf]
      %v294 = vld [vmem:[%s1 + $0x14] sm:$0xf]
      %v295 = vld [vmem:[%s1 + $0x18] sm:$0xf]
      %v296 = vld [vmem:[%s1 + $0x1c] sm:$0xf]
      %v297 = vld [vmem:[%s1 + $0x20] sm:$0xf]
      %v298 = vld [vmem:[%s1 + $0x24] sm:$0xf]
      %v299 = vld [vmem:[%s1 + $0x28] sm:$0xf]
      %v300 = vld [vmem:[%s1 + $0x2c] sm:$0xf]
      %v301 = vld [vmem:[%s1 + $0x30] sm:$0xf]
      %v302 = vld [vmem:[%s1 + $0x34] sm:$0xf]
      %v303 = vld [vmem:[%s1 + $0x38] sm:$0xf]
      %v304 = vld [vmem:[%s1 + $0x3c] sm:$0xf]
      %v305 = vld [vmem:[%s2] sm:$0x1]
      %v307 = vlaneseq
      %v308 = vshrl.u32 %v307, 7
      %v309 = vsub.s32 0, %v308
      %v310 = vrot.slane %v305, %v309
      %v318 = vunpack.c.l.b16 %v283
      %v319 = vunpack.c.l.b16 %v284
      %v320 = vunpack.c.l.b16 %v285
      %v321 = vunpack.c.l.b16 %v286
      %v322 = vunpack.c.l.b16 %v287
      %v323 = vunpack.c.l.b16 %v288
      %v324 = vpack.c.b16 %v319, %v318
      %v325 = vpack.c.b16 %v321, %v320
      %v326 = vpack.c.b16 %v323, %v322
      %v346 = vunpack.c.l.b16 %v289
      %v347 = vunpack.c.l.b16 %v290
      %v348 = vunpack.c.l.b16 %v291
      %v349 = vunpack.c.l.b16 %v292
      %v350 = vunpack.c.l.b16 %v293
      %v351 = vunpack.c.l.b16 %v294
      %v352 = vunpack.c.l.b16 %v295
      %v353 = vunpack.c.l.b16 %v296
      %v354 = vunpack.c.l.b16 %v297
      %v355 = vunpack.c.l.b16 %v298
      %v356 = vunpack.c.l.b16 %v299
      %v357 = vunpack.c.l.b16 %v300
      %v358 = vunpack.c.l.b16 %v301
      %v359 = vunpack.c.l.b16 %v302
      %v360 = vunpack.c.l.b16 %v303
      %v361 = vunpack.c.l.b16 %v304
      %v362 = vpack.c.b16 %v347, %v346
      %v363 = vpack.c.b16 %v349, %v348
      %v364 = vpack.c.b16 %v351, %v350
      %v365 = vpack.c.b16 %v353, %v352
      %v366 = vpack.c.b16 %v355, %v354
      %v367 = vpack.c.b16 %v357, %v356
      %v368 = vpack.c.b16 %v359, %v358
      %v369 = vpack.c.b16 %v361, %v360
      %378 = vmatprep.subr.bf16.mxu0 0
      %379 = vmatpush1.bf16.msra.mxu0 %v369
      %380 = vmatprep.subr.bf16.mxu0 0
      %381 = vmatpush1.bf16.msra.mxu0 %v368
      %382 = vmatprep.subr.bf16.mxu0 0
      %383 = vmatpush1.bf16.msra.mxu0 %v367
      %384 = vmatprep.subr.bf16.mxu0 0
      %385 = vmatpush1.bf16.msra.mxu0 %v366
      %386 = vmatprep.subr.bf16.mxu0 0
      %387 = vmatpush1.bf16.msra.mxu0 %v365
      %388 = vmatprep.subr.bf16.mxu0 0
      %389 = vmatpush1.bf16.msra.mxu0 %v364
      %390 = vmatprep.subr.bf16.mxu0 0
      %391 = vmatpush1.bf16.msra.mxu0 %v363
      %392 = vmatprep.subr.bf16.mxu0 0
      %393 = vmatpush1.bf16.msra.mxu0 %v362
      %394 = vmatprep.subr.bf16.mxu0 0
      %395 = vmatpush2.bf16.msra.mxu0 0
      %396 = vmatprep.subr.bf16.mxu0 0
      %397 = vmatpush2.bf16.msra.mxu0 0
      %398 = vmatprep.subr.bf16.mxu0 0
      %399 = vmatpush2.bf16.msra.mxu0 0
      %400 = vmatprep.subr.bf16.mxu0 0
      %401 = vmatpush2.bf16.msra.mxu0 0
      %402 = vmatprep.subr.bf16.mxu0 0
      %403 = vmatpush2.bf16.msra.mxu0 0
      %404 = vmatprep.subr.bf16.mxu0 0
      %405 = vmatpush2.bf16.msra.mxu0 0
      %406 = vmatprep.subr.bf16.mxu0 0
      %407 = vmatpush2.bf16.msra.mxu0 0
      %408 = vmatprep.subr.bf16.mxu0 0
      %409 = vmatpush2.bf16.msra.mxu0 0
      %410 = vmatprep.mubr.bf16.mxu0 0
      %411 = vmatmul.mubr.bf16.gmra.mxu0 %v324
      %v412 = vpop.f32.mrf.mxu0
      %v413 = vadd.f32 %v310, %v412
      %v414 = vpop.f32.mrf.mxu0
      %v415 = vpop.f32.mrf.mxu0
      %v416 = vadd.f32 %v310, %v415
      %v417 = vpop.f32.mrf.mxu0
      %418 = vmatprep.mubr.bf16.mxu0 0
      %419 = vmatmul.mubr.bf16.gmra.mxu0 %v325
      %v420 = vpop.f32.mrf.mxu0
      %v421 = vadd.f32 %v310, %v420
      %v422 = vpop.f32.mrf.mxu0
      %v423 = vpop.f32.mrf.mxu0
      %v424 = vadd.f32 %v310, %v423
      %v425 = vpop.f32.mrf.mxu0
      %426 = vmatprep.mubr.bf16.mxu0 0
      %427 = vmatmul.mubr.bf16.gmra.mxu0 %v326
      %v428 = vpop.f32.mrf.mxu0
      %v429 = vadd.f32 %v310, %v428
      %v430 = vpop.f32.mrf.mxu0
      %v431 = vpop.f32.mrf.mxu0
      %v432 = vadd.f32 %v310, %v431
      %v433 = vpop.f32.mrf.mxu0
      %434 = vdwg.mxu0
      %v435 = vmax.f32 %v413, 0.0
      %v436 = vmax.f32 %v416, 0.0
      %v437 = vmax.f32 %v421, 0.0
      %v438 = vmax.f32 %v424, 0.0
      %v439 = vmax.f32 %v429, 0.0
      %v440 = vmax.f32 %v432, 0.0
      %v441 = vpack.c.bf16 %v436, %v435
      %v442 = vpack.c.bf16 %v438, %v437
      %v443 = vpack.c.bf16 %v440, %v439
      %v444 = vld [vmem:[%s3] sm:$0xf]
      %v445 = vld [vmem:[%s3 + $0x4] sm:$0xf]
      %v446 = vld [vmem:[%s3 + $0x8] sm:$0xf]
      %v447 = vld [vmem:[%s3 + $0xc] sm:$0xf]
      %v448 = vld [vmem:[%s3 + $0x10] sm:$0xf]
      %v449 = vld [vmem:[%s3 + $0x14] sm:$0xf]
      %v450 = vld [vmem:[%s3 + $0x18] sm:$0xf]
      %v451 = vld [vmem:[%s3 + $0x1c] sm:$0xf]
      %v452 = vld [vmem:[%s3 + $0x20] sm:$0xf]
      %v453 = vld [vmem:[%s3 + $0x24] sm:$0xf]
      %v454 = vld [vmem:[%s3 + $0x28] sm:$0xf]
      %v455 = vld [vmem:[%s3 + $0x2c] sm:$0xf]
      %v456 = vld [vmem:[%s3 + $0x30] sm:$0xf]
      %v457 = vld [vmem:[%s3 + $0x34] sm:$0xf]
      %v458 = vld [vmem:[%s3 + $0x38] sm:$0xf]
      %v459 = vld [vmem:[%s3 + $0x3c] sm:$0xf]
      %v460 = vld [vmem:[%s4] sm:$0x1]
      %v462 = vlaneseq
      %v463 = vshrl.u32 %v462, 7
      %v464 = vsub.s32 0, %v463
      %v465 = vrot.slane %v460, %v464
      %v483 = vunpack.c.l.b16 %v444
      %v484 = vunpack.c.l.b16 %v445
      %v485 = vunpack.c.l.b16 %v446
      %v486 = vunpack.c.l.b16 %v447
      %v487 = vunpack.c.l.b16 %v448
      %v488 = vunpack.c.l.b16 %v449
      %v489 = vunpack.c.l.b16 %v450
      %v490 = vunpack.c.l.b16 %v451
      %v491 = vunpack.c.l.b16 %v452
      %v492 = vunpack.c.l.b16 %v453
      %v493 = vunpack.c.l.b16 %v454
      %v494 = vunpack.c.l.b16 %v455
      %v495 = vunpack.c.l.b16 %v456
      %v496 = vunpack.c.l.b16 %v457
      %v497 = vunpack.c.l.b16 %v458
      %v498 = vunpack.c.l.b16 %v459
      %v499 = vpack.c.b16 %v484, %v483
      %v500 = vpack.c.b16 %v486, %v485
      %v501 = vpack.c.b16 %v488, %v487
      %v502 = vpack.c.b16 %v490, %v489
      %v503 = vpack.c.b16 %v492, %v491
      %v504 = vpack.c.b16 %v494, %v493
      %v505 = vpack.c.b16 %v496, %v495
      %v506 = vpack.c.b16 %v498, %v497
      %515 = vmatprep.subr.bf16.mxu0 0
      %516 = vmatpush1.bf16.msra.mxu0 %v506
      %517 = vmatprep.subr.bf16.mxu0 0
      %518 = vmatpush1.bf16.msra.mxu0 %v505
      %519 = vmatprep.subr.bf16.mxu0 0
      %520 = vmatpush1.bf16.msra.mxu0 %v504
      %521 = vmatprep.subr.bf16.mxu0 0
      %522 = vmatpush1.bf16.msra.mxu0 %v503
      %523 = vmatprep.subr.bf16.mxu0 0
      %524 = vmatpush1.bf16.msra.mxu0 %v502
      %525 = vmatprep.subr.bf16.mxu0 0
      %526 = vmatpush1.bf16.msra.mxu0 %v501
      %527 = vmatprep.subr.bf16.mxu0 0
      %528 = vmatpush1.bf16.msra.mxu0 %v500
      %529 = vmatprep.subr.bf16.mxu0 0
      %530 = vmatpush1.bf16.msra.mxu0 %v499
      %531 = vmatprep.subr.bf16.mxu0 0
      %532 = vmatpush2.bf16.msra.mxu0 0
      %533 = vmatprep.subr.bf16.mxu0 0
      %534 = vmatpush2.bf16.msra.mxu0 0
      %535 = vmatprep.subr.bf16.mxu0 0
      %536 = vmatpush2.bf16.msra.mxu0 0
      %537 = vmatprep.subr.bf16.mxu0 0
      %538 = vmatpush2.bf16.msra.mxu0 0
      %539 = vmatprep.subr.bf16.mxu0 0
      %540 = vmatpush2.bf16.msra.mxu0 0
      %541 = vmatprep.subr.bf16.mxu0 0
      %542 = vmatpush2.bf16.msra.mxu0 0
      %543 = vmatprep.subr.bf16.mxu0 0
      %544 = vmatpush2.bf16.msra.mxu0 0
      %545 = vmatprep.subr.bf16.mxu0 0
      %546 = vmatpush2.bf16.msra.mxu0 0
      %547 = vmatprep.mubr.bf16.mxu0 0
      %548 = vmatmul.mubr.bf16.gmra.mxu0 %v441
      %v549 = vpop.f32.mrf.mxu0
      %v550 = vadd.f32 %v465, %v549
      %v551 = vpop.f32.mrf.mxu0
      %v552 = vpop.f32.mrf.mxu0
      %v553 = vadd.f32 %v465, %v552
      %v554 = vpop.f32.mrf.mxu0
      %555 = vmatprep.mubr.bf16.mxu0 0
      %556 = vmatmul.mubr.bf16.gmra.mxu0 %v442
      %v557 = vpop.f32.mrf.mxu0
      %v558 = vadd.f32 %v465, %v557
      %v559 = vpop.f32.mrf.mxu0
      %v560 = vpop.f32.mrf.mxu0
      %v561 = vadd.f32 %v465, %v560
      %v562 = vpop.f32.mrf.mxu0
      %563 = vmatprep.mubr.bf16.mxu0 0
      %564 = vmatmul.mubr.bf16.gmra.mxu0 %v443
      %v565 = vpop.f32.mrf.mxu0
      %v566 = vadd.f32 %v465, %v565
      %v567 = vpop.f32.mrf.mxu0
      %v568 = vpop.f32.mrf.mxu0
      %v569 = vadd.f32 %v465, %v568
      %v570 = vpop.f32.mrf.mxu0
      %571 = vdwg.mxu0
      %v572 = vmax.f32 %v550, 0.0
      %v573 = vmax.f32 %v553, 0.0
      %v574 = vmax.f32 %v558, 0.0
      %v575 = vmax.f32 %v561, 0.0
      %v576 = vmax.f32 %v566, 0.0
      %v577 = vmax.f32 %v569, 0.0
      %v578 = vpack.c.bf16 %v573, %v572
      %v579 = vpack.c.bf16 %v575, %v574
      %v580 = vpack.c.bf16 %v577, %v576
      %v581 = vld [vmem:[%s5] sm:$0xf]
      %v582 = vld [vmem:[%s5 + $0x4] sm:$0xf]
      %v583 = vld [vmem:[%s5 + $0x8] sm:$0xf]
      %v584 = vld [vmem:[%s5 + $0xc] sm:$0xf]
      %v585 = vld [vmem:[%s5 + $0x10] sm:$0xf]
      %v586 = vld [vmem:[%s5 + $0x14] sm:$0xf]
      %v587 = vld [vmem:[%s5 + $0x18] sm:$0xf]
      %v588 = vld [vmem:[%s5 + $0x1c] sm:$0xf]
      %v589 = vld [vmem:[%s5 + $0x20] sm:$0xf]
      %v590 = vld [vmem:[%s5 + $0x24] sm:$0xf]
      %v591 = vld [vmem:[%s5 + $0x28] sm:$0xf]
      %v592 = vld [vmem:[%s5 + $0x2c] sm:$0xf]
      %v593 = vld [vmem:[%s5 + $0x30] sm:$0xf]
      %v594 = vld [vmem:[%s5 + $0x34] sm:$0xf]
      %v595 = vld [vmem:[%s5 + $0x38] sm:$0xf]
      %v596 = vld [vmem:[%s5 + $0x3c] sm:$0xf]
      %v597 = vld [vmem:[%s6] sm:$0x1]
      %v599 = vlaneseq
      %v600 = vshrl.u32 %v599, 7
      %v601 = vsub.s32 0, %v600
      %v602 = vrot.slane %v597, %v601
      %v620 = vunpack.c.l.b16 %v581
      %v621 = vunpack.c.l.b16 %v582
      %v622 = vunpack.c.l.b16 %v583
      %v623 = vunpack.c.l.b16 %v584
      %v624 = vunpack.c.l.b16 %v585
      %v625 = vunpack.c.l.b16 %v586
      %v626 = vunpack.c.l.b16 %v587
      %v627 = vunpack.c.l.b16 %v588
      %v628 = vunpack.c.l.b16 %v589
      %v629 = vunpack.c.l.b16 %v590
      %v630 = vunpack.c.l.b16 %v591
      %v631 = vunpack.c.l.b16 %v592
      %v632 = vunpack.c.l.b16 %v593
      %v633 = vunpack.c.l.b16 %v594
      %v634 = vunpack.c.l.b16 %v595
      %v635 = vunpack.c.l.b16 %v596
      %v636 = vpack.c.b16 %v621, %v620
      %v637 = vpack.c.b16 %v623, %v622
      %v638 = vpack.c.b16 %v625, %v624
      %v639 = vpack.c.b16 %v627, %v626
      %v640 = vpack.c.b16 %v629, %v628
      %v641 = vpack.c.b16 %v631, %v630
      %v642 = vpack.c.b16 %v633, %v632
      %v643 = vpack.c.b16 %v635, %v634
      %652 = vmatprep.subr.bf16.mxu0 0
      %653 = vmatpush1.bf16.msra.mxu0 %v643
      %654 = vmatprep.subr.bf16.mxu0 0
      %655 = vmatpush1.bf16.msra.mxu0 %v642
      %656 = vmatprep.subr.bf16.mxu0 0
      %657 = vmatpush1.bf16.msra.mxu0 %v641
      %658 = vmatprep.subr.bf16.mxu0 0
      %659 = vmatpush1.bf16.msra.mxu0 %v640
      %660 = vmatprep.subr.bf16.mxu0 0
      %661 = vmatpush1.bf16.msra.mxu0 %v639
      %662 = vmatprep.subr.bf16.mxu0 0
      %663 = vmatpush1.bf16.msra.mxu0 %v638
      %664 = vmatprep.subr.bf16.mxu0 0
      %665 = vmatpush1.bf16.msra.mxu0 %v637
      %666 = vmatprep.subr.bf16.mxu0 0
      %667 = vmatpush1.bf16.msra.mxu0 %v636
      %668 = vmatprep.subr.bf16.mxu0 0
      %669 = vmatpush2.bf16.msra.mxu0 0
      %670 = vmatprep.subr.bf16.mxu0 0
      %671 = vmatpush2.bf16.msra.mxu0 0
      %672 = vmatprep.subr.bf16.mxu0 0
      %673 = vmatpush2.bf16.msra.mxu0 0
      %674 = vmatprep.subr.bf16.mxu0 0
      %675 = vmatpush2.bf16.msra.mxu0 0
      %676 = vmatprep.subr.bf16.mxu0 0
      %677 = vmatpush2.bf16.msra.mxu0 0
      %678 = vmatprep.subr.bf16.mxu0 0
      %679 = vmatpush2.bf16.msra.mxu0 0
      %680 = vmatprep.subr.bf16.mxu0 0
      %681 = vmatpush2.bf16.msra.mxu0 0
      %682 = vmatprep.subr.bf16.mxu0 0
      %683 = vmatpush2.bf16.msra.mxu0 0
      %684 = vmatprep.mubr.bf16.mxu0 0
      %685 = vmatmul.mubr.bf16.gmra.mxu0 %v578
      %v686 = vpop.f32.mrf.mxu0
      %v687 = vadd.f32 %v602, %v686
      %v688 = vpop.f32.mrf.mxu0
      %v689 = vpop.f32.mrf.mxu0
      %v690 = vadd.f32 %v602, %v689
      %v691 = vpop.f32.mrf.mxu0
      %692 = vmatprep.mubr.bf16.mxu0 0
      %693 = vmatmul.mubr.bf16.gmra.mxu0 %v579
      %v694 = vpop.f32.mrf.mxu0
      %v695 = vadd.f32 %v602, %v694
      %v696 = vpop.f32.mrf.mxu0
      %v697 = vpop.f32.mrf.mxu0
      %v698 = vadd.f32 %v602, %v697
      %v699 = vpop.f32.mrf.mxu0
      %700 = vmatprep.mubr.bf16.mxu0 0
      %701 = vmatmul.mubr.bf16.gmra.mxu0 %v580
      %v702 = vpop.f32.mrf.mxu0
      %v703 = vadd.f32 %v602, %v702
      %v704 = vpop.f32.mrf.mxu0
      %v705 = vpop.f32.mrf.mxu0
      %v706 = vadd.f32 %v602, %v705
      %v707 = vpop.f32.mrf.mxu0
      %708 = vdwg.mxu0
      %709 = vst [vmem:[%s280] sm:$0xff] %v687
      %710 = vst [vmem:[%s280 + $0x8] sm:$0xff] %v690
      %711 = vst [vmem:[%s280 + $0x10] sm:$0xff] %v695
      %712 = vst [vmem:[%s280 + $0x18] sm:$0xff] %v698
      %713 = vst [vmem:[%s280 + $0x20] sm:$0xff] %v703
      %714 = vst [vmem:[%s280 + $0x28] sm:$0xff] %v706
      %s715 = smul.u32 6, %s18
      %p716 = scmp.lt.s32.totalorder %s715, 11
      %s717 = scalar_select %p716, %s715, 11
      %s718 = smul.addr %s717, 8
      %s719 = scalar_lea.vmem %s7, %s718
      // Predicated region
      $region49: #{multi_discrete_policy_forward.1} parent=47 // pred_check
        %p720 = pneg %p188
      $region50: #{multi_discrete_policy_forward.1} parent=47 // pred_check_branch
        %722 = sbr.rel (%p720) target = $region52
      $region51: #{multi_discrete_policy_forward.1} parent=47 // pred_region
        %s723 = smul.u32 6, %s18
      $region52: #{multi_discrete_policy_forward.1} parent=47 // pred_fallthru
        _
    $region48: #{multi_discrete_policy_forward.1} parent=5 // pred_fallthru
      _
    %p724 = scmp.le.s32.totalorder 2, %s13
    // Predicated region
    $region53: #{multi_discrete_policy_forward.1} parent=5 // pred_check
      %p725 = pneg %p724
    $region54: #{multi_discrete_policy_forward.1} parent=5 // pred_check_branch
      %727 = sbr.rel (%p725) target = $region56
    $region55: #{multi_discrete_policy_forward.1} parent=5 // pred_region
      %s728 = ssub.s32 %s13, 2
      // Predicated region
      $region57: #{multi_discrete_policy_forward.1} parent=55 // pred_check
        %p729 = pneg %p194
      $region58: #{multi_discrete_policy_forward.1} parent=55 // pred_check_branch
        %731 = sbr.rel (%p729) target = $region60
      $region59: #{multi_discrete_policy_forward.1} parent=55 // pred_region
        %s732 = smul.u32 6, %s19
        %p733 = scmp.lt.s32.totalorder %s732, 11
        %s734 = scalar_select %p733, %s732, 11
        %s735 = smul.addr %s734, 8
        %s736 = scalar_lea.vmem %s7, %s735
      $region60: #{multi_discrete_policy_forward.1} parent=55 // pred_fallthru
        _
    $region56: #{multi_discrete_policy_forward.1} parent=5 // pred_fallthru
      _
  $region6: #{multi_discrete_policy_forward.1} parent=0 // loop_footer
    %s17 = sadd.s32 1, %s13
  $region7: #{multi_discrete_policy_forward.1} parent=0 // loop_footer_branch
    %12 = sbr.rel target = $region3
  $region8: #{multi_discrete_policy_forward.1} parent=0 // loop_exit
    _

</llo_original>
